<compile_context>
chip_gen: v6e
topology: v6e:2x2x1
jax: 0.10.0
libtpu: 0.0.40
codegen_flags: <defaults>
</compile_context>

<pallas_src>
import jax
import jax.numpy as jnp
from jax.experimental import pallas as pl
from jax.experimental.pallas import tpu as pltpu


def fused_affine_softmax_kernel(w_ref, b_ref, x_ref, o_ref):
    """w_ref: (3, 11), b_ref: (3, 1), x_ref: (11, TB), o_ref: (3, TB)."""
    # Fused fc1+fc2:  logits = W @ x + b   -> (3, TB), batch on lanes.
    logits = jnp.dot(w_ref[...], x_ref[...],
                     preferred_element_type=jnp.float32) + b_ref[...]
    # Numerically stable softmax over the 3 classes (sublane axis).
    m = jnp.max(logits, axis=0, keepdims=True)            # (1, TB)
    e = jnp.exp(logits - m)                               # (3, TB)
    denom = jnp.sum(e, axis=0, keepdims=True)             # (1, TB)
    o_ref[...] = e * pl.reciprocal(denom, approx=False)


def _round_up(n, m):
    return ((n + m - 1) // m) * m


def gss_main_task_forward_t(x_t, w1, b1, w2, b2, *, tb=32768):
    """Lane-dense entry point: x_t is (11, B) f32, returns (3, B) softmax probs.

    No wrapper-side layout passes; use this when the producer / consumer can
    supply / accept the transposed layout (the transpose then fuses upstream).
    """
    assert x_t.shape[0] == 11
    B = x_t.shape[1]
    assert tb % 128 == 0, "batch tile must be a multiple of 128 lanes"

    # Algebraic fusion of the two bias-only Linears (exact to f32 rounding).
    w_f = (w1 @ w2).T            # (3, 11)
    b_f = (b1 @ w2 + b2).T       # (3, 1)

    # Tile choice: as large as requested, but (a) never much larger than B and
    # (b) clamped so the grid has >= 2 steps when possible (v7x megacore).
    tb_eff = min(tb, max(128, _round_up(pl.cdiv(B, 2), 128)))
    n_steps = pl.cdiv(B, tb_eff)

    # Double-buffered VMEM: (11->16, tb) + (3->8, tb) f32 blocks = 192*tb bytes.
    vmem_limit = int(min(48 * 1024 * 1024,
                         max(32 * 1024 * 1024, 4 * 192 * tb_eff)))

    return pl.pallas_call(
        fused_affine_softmax_kernel,
        out_shape=jax.ShapeDtypeStruct((3, B), jnp.float32),
        grid_spec=pltpu.PrefetchScalarGridSpec(
            num_scalar_prefetch=0,
            grid=(n_steps,),
            in_specs=[
                # Fused weights/bias: same block every step -> VMEM resident.
                pl.BlockSpec((3, 11), lambda i: (0, 0)),
                pl.BlockSpec((3, 1), lambda i: (0, 0)),
                # Streaming batch tile (11, TB), double-buffered by Pallas.
                pl.BlockSpec((11, tb_eff), lambda i: (0, i)),
            ],
            out_specs=pl.BlockSpec((3, tb_eff), lambda i: (0, i)),
        ),
        compiler_params=pltpu.CompilerParams(
            dimension_semantics=("parallel",),   # shard batch grid on v7x TCs
            vmem_limit_bytes=vmem_limit,
        ),
    )(w_f, b_f, x_t)


def gss_main_task_forward(x, w1, b1, w2, b2, *, tb=32768):
    """PyTorch-layout wrapper: x is (B, 11) f32, returns (B, 3) softmax."""
    out_t = gss_main_task_forward_t(x.T, w1, b1, w2, b2, tb=tb)
    return out_t.T


def init_params(key):
    """Deterministic init mimicking nn.Linear's U(-1/sqrt(fan_in), +1/sqrt(fan_in))."""
    k1, k2, k3, k4 = jax.random.split(key, 4)
    bound1 = 1.0 / jnp.sqrt(11.0)
    bound2 = 1.0 / jnp.sqrt(7.0)
    # stored transposed relative to torch: [in, out]
    w1 = jax.random.uniform(k1, (11, 7), jnp.float32, -bound1, bound1)
    b1 = jax.random.uniform(k2, (1, 7), jnp.float32, -bound1, bound1)
    w2 = jax.random.uniform(k3, (7, 3), jnp.float32, -bound2, bound2)
    b2 = jax.random.uniform(k4, (1, 3), jnp.float32, -bound2, bound2)
    return w1, b1, w2, b2


if __name__ == "__main__":
    key = jax.random.PRNGKey(0)
    k_x, k_p, k_x2 = jax.random.split(key, 3)

    w1, b1, w2, b2 = init_params(k_p)

    def ref_fn(xx):
        return jax.nn.softmax((xx @ w1 + b1) @ w2 + b2, axis=1)

    # Small batch: single grid step.
    B = 8
    x = jax.random.normal(k_x, (B, 11), jnp.float32)
    out = jax.block_until_ready(gss_main_task_forward(x, w1, b1, w2, b2))
    assert out.shape == (B, 3)
    assert jnp.allclose(out, ref_fn(x), atol=1e-5, rtol=1e-5)
    assert jnp.allclose(jnp.sum(out, axis=1), 1.0, atol=1e-5)

    # Multi-step grid with a ragged tail block (exercises the no-pad path).
    B2 = 300
    x2 = jax.random.normal(k_x2, (B2, 11), jnp.float32)
    out2 = jax.block_until_ready(gss_main_task_forward(x2, w1, b1, w2, b2))
    assert out2.shape == (B2, 3)
    assert jnp.allclose(out2, ref_fn(x2), atol=1e-5, rtol=1e-5)
    assert jnp.allclose(jnp.sum(out2, axis=1), 1.0, atol=1e-5)

    print("KERNEL_OK")
</pallas_src>

<mosaic_0001>
module attributes {stable_mosaic.version = 11 : i64} {
  func.func @fused_affine_softmax_kernel(%arg0: i32, %arg1: memref<3x11xf32, #tpu.memory_space<vmem>>, %arg2: memref<3x1xf32, #tpu.memory_space<vmem>>, %arg3: memref<11x128xf32, #tpu.memory_space<vmem>>, %arg4: memref<3x128xf32, #tpu.memory_space<vmem>>) attributes {dimension_semantics = [#tpu.dimension_semantics<parallel>], iteration_bounds = array<i64: 1>, scalar_prefetch = 0 : i64, scratch_operands = 0 : i64, tpu.core_type = #tpu.core_type<tc>, window_params = [{pipeline_mode = #tpu.pipeline_mode<synchronous>, transform_indices = @transform_0, window_bounds = array<i64: 3, 11>}, {pipeline_mode = #tpu.pipeline_mode<synchronous>, transform_indices = @transform_1, window_bounds = array<i64: 3, 1>}, {transform_indices = @transform_2, window_bounds = array<i64: 11, 128>}, {transform_indices = @transform_3, window_bounds = array<i64: 3, 128>}]} {
    %c0 = arith.constant 0 : index
    %c0_0 = arith.constant 0 : index
    %0 = vector.load %arg1[%c0, %c0_0] : memref<3x11xf32, #tpu.memory_space<vmem>>, vector<3x11xf32>
    %c0_1 = arith.constant 0 : index
    %c0_2 = arith.constant 0 : index
    %1 = vector.load %arg3[%c0_1, %c0_2] : memref<11x128xf32, #tpu.memory_space<vmem>>, vector<11x128xf32>
    %cst = arith.constant dense<0.000000e+00> : vector<3x128xf32>
    %2 = tpu.matmul %0, %1, %cst {dimension_numbers = #tpu.dot_dimension_numbers<[1], [0], [0], [1], [0, 0, 1, 1], [], []>} : vector<3x11xf32>, vector<11x128xf32>, vector<3x128xf32> -> vector<3x128xf32>
    %c0_3 = arith.constant 0 : index
    %c0_4 = arith.constant 0 : index
    %3 = vector.load %arg2[%c0_3, %c0_4] : memref<3x1xf32, #tpu.memory_space<vmem>>, vector<3x1xf32>
    %4 = vector.broadcast %3 : vector<3x1xf32> to vector<3x128xf32>
    %5 = arith.addf %2, %4 : vector<3x128xf32>
    %cst_5 = arith.constant dense<0xFF800000> : vector<128xf32>
    %6 = vector.multi_reduction <maximumf>, %5, %cst_5 [0] : vector<3x128xf32> to vector<128xf32>
    %7 = vector.shape_cast %6 : vector<128xf32> to vector<1x128xf32>
    %8 = vector.broadcast %7 : vector<1x128xf32> to vector<3x128xf32>
    %9 = arith.subf %5, %8 : vector<3x128xf32>
    %10 = math.exp %9 : vector<3x128xf32>
    %cst_6 = arith.constant dense<0.000000e+00> : vector<128xf32>
    %11 = vector.multi_reduction <add>, %10, %cst_6 [0] : vector<3x128xf32> to vector<128xf32>
    %12 = vector.shape_cast %11 : vector<128xf32> to vector<1x128xf32>
    %13 = tpu.reciprocal %12 : vector<1x128xf32> -> vector<1x128xf32>
    %14 = vector.broadcast %13 : vector<1x128xf32> to vector<3x128xf32>
    %15 = arith.mulf %10, %14 : vector<3x128xf32>
    %c0_7 = arith.constant 0 : index
    %c0_8 = arith.constant 0 : index
    %16 = vector.load %arg4[%c0_7, %c0_8] : memref<3x128xf32, #tpu.memory_space<vmem>>, vector<3x128xf32>
    tpu.vector_store %arg4[%c0_7, %c0_8], %15 {strides = array<i32>} : memref<3x128xf32, #tpu.memory_space<vmem>>, vector<3x128xf32>,
    return
  }
  func.func @transform_0(%arg0: i32) -> (i32, i32) {
    %c0_i32 = arith.constant 0 : i32
    %c0_i32_0 = arith.constant 0 : i32
    %c0_i32_1 = arith.constant 0 : i32
    return %c0_i32, %c0_i32_0 : i32, i32
  }
  func.func @transform_1(%arg0: i32) -> (i32, i32) {
    %c0_i32 = arith.constant 0 : i32
    %c0_i32_0 = arith.constant 0 : i32
    %c0_i32_1 = arith.constant 0 : i32
    return %c0_i32, %c0_i32_0 : i32, i32
  }
  func.func @transform_2(%arg0: i32) -> (i32, i32) {
    %c0_i32 = arith.constant 0 : i32
    %c0_i32_0 = arith.constant 0 : i32
    return %c0_i32, %arg0 : i32, i32
  }
  func.func @transform_3(%arg0: i32) -> (i32, i32) {
    %c0_i32 = arith.constant 0 : i32
    %c0_i32_0 = arith.constant 0 : i32
    return %c0_i32, %arg0 : i32, i32
  }
}

</mosaic_0001>

<llo_original>
// kernel: tpu_custom_call.1
$region0: #{tpu_custom_call.1}
  #allocation0 [shape = 'u32[]', space=smem, size = 0x4, offset = 0x4, fixed_abs, tag = 'smem constant byte address 0x4 - core index']
  #allocation1 [shape = 'u32[144,128]{1,0:T(1,128)}', space=vmem, size = 0x12000, scoped, tag = 'internal scratch']
  %s0 = inlined_call_operand.vmem [shape: f32[3,11], index: 0, kind: input, shape index: {}]
  %s1 = inlined_call_operand.vmem [shape: f32[3,1], index: 1, kind: input, shape index: {}]
  %s2 = inlined_call_operand.vmem [shape: f32[11,8], index: 2, kind: input, shape index: {}]
  %s3 = inlined_call_operand.hbm [shape: f32[3,8], index: 3, kind: output, shape index: {}]
  %s4 = sld [smem:[#allocation0]]
  $region22: #{tpu_custom_call.1} parent=0
    _
  %s6 = ssub.s32 1, %s4
  %s7 = scalar_select 0, %s6, %s4
  $region1: #{tpu_custom_call.1} parent=0
    #allocation2 [shape = 'u8[2048]{0}', space=vmem, size = 0x800, scoped, tag = 'output window, operand 0, single buffered']
    #allocation3 [shape = 's32[1]{0}', space=sflag, size = 0x4, scoped, tag = 'scoped memory for tpu_custom_call.1']
    %8 = vsyncpa [#allocation3], 0
    // Predicated region
    $region2: #{tpu_custom_call.1} parent=1 // pred_check
      _
    $region3: #{tpu_custom_call.1} parent=1 // pred_check_branch
      %10 = sbr.rel (0) target = $region5
    $region4: #{tpu_custom_call.1} parent=1 // pred_region
      _
    $region5: #{tpu_custom_call.1} parent=1 // pred_fallthru
      _
    // Predicated region
    $region6: #{tpu_custom_call.1} parent=1 // pred_check
      _
    $region7: #{tpu_custom_call.1} parent=1 // pred_check_branch
      %12 = sbr.rel (0) target = $region9
    $region8: #{tpu_custom_call.1} parent=1 // pred_region
      _
    $region9: #{tpu_custom_call.1} parent=1 // pred_fallthru
      _
    // Predicated region
    $region10: #{tpu_custom_call.1} parent=1 // pred_check
      _
    $region11: #{tpu_custom_call.1} parent=1 // pred_check_branch
      %14 = sbr.rel (0) target = $region13
    $region12: #{tpu_custom_call.1} parent=1 // pred_region
      _
    $region13: #{tpu_custom_call.1} parent=1 // pred_fallthru
      _
    %v15 = vld [vmem:[%s0] sm:$0x7]
    %v16 = vld [vmem:[%s2] sm:$0xff]
    %v17 = vld [vmem:[%s2 + $0x8] sm:$0x7]
    %v18 = vld [vmem:[%s1] sm:$0x7]
    %20 = vset.pattern.permute.xlu0 0
    %21 = vperm.xlu0 %20, %v18
    %v22 = vpop.permute.xlu0 %21
    %vm24 = vcmask 89088
    %v26 = vsel %vm24, %v15, 0
    %vm28 = vcmask 1042432
    %v30 = vsel %vm28, %v17, 0
    %32 = vmatprep.subr.mxu0 0.0
    %33 = vmatpush1.msra.mxu0 0.0
    %34 = vmatprep.subr.mxu0 0.0
    %35 = vmatpush1.msra.mxu0 0.0
    %36 = vmatprep.subr.mxu0 0.0
    %37 = vmatpush1.msra.mxu0 0.0
    %38 = vmatprep.subr.mxu0 0.0
    %39 = vmatpush1.msra.mxu0 0.0
    %40 = vmatprep.subr.mxu0 0.0
    %41 = vmatpush1.msra.mxu0 0.0
    %42 = vmatprep.subr.mxu0 0.0
    %43 = vmatpush1.msra.mxu0 0.0
    %44 = vmatprep.subr.mxu0 0.0
    %45 = vmatpush1.msra.mxu0 0.0
    %46 = vmatprep.subr.mxu0 0.0
    %47 = vmatpush1.msra.mxu0 0.0
    %48 = vmatprep.subr.mxu0 0.0
    %49 = vmatpush1.msra.mxu0 0.0
    %50 = vmatprep.subr.mxu0 0.0
    %51 = vmatpush1.msra.mxu0 0.0
    %52 = vmatprep.subr.mxu0 0.0
    %53 = vmatpush1.msra.mxu0 0.0
    %54 = vmatprep.subr.mxu0 0.0
    %55 = vmatpush1.msra.mxu0 0.0
    %56 = vmatprep.subr.mxu0 0.0
    %57 = vmatpush1.msra.mxu0 0.0
    %58 = vmatprep.subr.mxu0 0.0
    %59 = vmatpush1.msra.mxu0 0.0
    %60 = vmatprep.subr.mxu0 0.0
    %61 = vmatpush1.msra.mxu0 %v30
    %62 = vmatprep.subr.mxu0 0.0
    %63 = vmatpush1.msra.mxu0 %v16
    %64 = vmatprep.subr.mxu0 0.0
    %65 = vmatpush2.msra.mxu0 0.0
    %66 = vmatprep.subr.mxu0 0.0
    %67 = vmatpush2.msra.mxu0 0.0
    %68 = vmatprep.subr.mxu0 0.0
    %69 = vmatpush2.msra.mxu0 0.0
    %70 = vmatprep.subr.mxu0 0.0
    %71 = vmatpush2.msra.mxu0 0.0
    %72 = vmatprep.subr.mxu0 0.0
    %73 = vmatpush2.msra.mxu0 0.0
    %74 = vmatprep.subr.mxu0 0.0
    %75 = vmatpush2.msra.mxu0 0.0
    %76 = vmatprep.subr.mxu0 0.0
    %77 = vmatpush2.msra.mxu0 0.0
    %78 = vmatprep.subr.mxu0 0.0
    %79 = vmatpush2.msra.mxu0 0.0
    %80 = vmatprep.subr.mxu0 0.0
    %81 = vmatpush2.msra.mxu0 0.0
    %82 = vmatprep.subr.mxu0 0.0
    %83 = vmatpush2.msra.mxu0 0.0
    %84 = vmatprep.subr.mxu0 0.0
    %85 = vmatpush2.msra.mxu0 0.0
    %86 = vmatprep.subr.mxu0 0.0
    %87 = vmatpush2.msra.mxu0 0.0
    %88 = vmatprep.subr.mxu0 0.0
    %89 = vmatpush2.msra.mxu0 0.0
    %90 = vmatprep.subr.mxu0 0.0
    %91 = vmatpush2.msra.mxu0 0.0
    %92 = vmatprep.subr.mxu0 0.0
    %93 = vmatpush2.msra.mxu0 0.0
    %94 = vmatprep.subr.mxu0 0.0
    %95 = vmatpush2.msra.mxu0 0.0
    %96 = vmatprep.mubr.f32.mxu0 0.0
    %97 = vmatmul.mubr.f32.gmra.mxu0 %v26
    %v98 = vpop.f32.mrf.mxu0
    %v99 = vadd.f32 %v22, %v98
    %v100 = vpop.f32.mrf.mxu0
    %101 = vdwg.mxu0
    %v102 = vsel %vm28, %v99, -inf
    %v103 = vrot.slane %v102, 4
    %v104 = vmax.f32 %v102, %v103
    %v105 = vrot.slane %v104, 2
    %v106 = vmax.f32 %v104, %v105
    %v107 = vrot.slane %v106, 1
    %v108 = vmax.f32 %v106, %v107
    %v109 = vsub.f32 %v99, %v108
    %v110 = vmul.f32 %v109, 1.442695
    %v111 = vpow.pop %v110
    %v112 = vsel %vm28, %v111, 0.0
    %v113 = vrot.slane %v112, 4
    %v114 = vadd.f32 %v112, %v113
    %v115 = vrot.slane %v114, 2
    %v116 = vadd.f32 %v114, %v115
    %v117 = vrot.slane %v116, 1
    %v118 = vadd.f32 %v116, %v117
    %v119 = vrcp.pop %v118
    %v120 = vmul.f32 %v111, %v119
    %121 = vst [vmem:[#allocation2] sm:$0x7] %v120
    // Predicated region
    $region14: #{tpu_custom_call.1} parent=1 // pred_check
      _
    $region15: #{tpu_custom_call.1} parent=1 // pred_check_branch
      %123 = sbr.rel (0) target = $region17
    $region16: #{tpu_custom_call.1} parent=1 // pred_region
      %s125 = ssub.s32 64, 64
      %126 = vsyncadd [#allocation3], %s125
      %s128 = sshll.u32 [#allocation2], 4
      %s129 = int_to_ptr.vmem [resolvable:$true] %s128
      %131 = dma.vmem_to_hbm [thread:$0]  %s129, 64, %s3, [#allocation3]
    $region17: #{tpu_custom_call.1} parent=1 // pred_fallthru
      _
    // Predicated region
    $region18: #{tpu_custom_call.1} parent=1 // pred_check
      _
    $region19: #{tpu_custom_call.1} parent=1 // pred_check_branch
      %133 = sbr.rel (0) target = $region21
    $region20: #{tpu_custom_call.1} parent=1 // pred_region
      %134 = dma.done [#allocation3], 64
    $region21: #{tpu_custom_call.1} parent=1 // pred_fallthru
      _
    %135 = vsyncpa [#allocation3], 1

</llo_original>
